<compile_context>
chip_gen: v7x
topology: tpu7x:2x2x1
jax: 0.10.0
libtpu: 0.0.40
codegen_flags: <defaults>
</compile_context>

<pallas_src>
import math
from functools import partial

import jax
import jax.numpy as jnp
from jax import lax
from jax.experimental import pallas as pl
from jax.experimental.pallas import tpu as pltpu

LRELU_SLOPE = 0.2
PIXELNORM_EPS = 1e-8


def _convblock_kernel(p_ref, w_ref, b_ref, o_ref, *, act, norm):
    # p_ref: (K, TL)   im2col patches tile   (K = C_in*KH*KW, TL = lane tile)
    # w_ref: (C_out, K) pre-scaled weights
    # b_ref: (C_out, 1) bias
    # o_ref: (C_out, TL) output tile
    p = p_ref[...].astype(jnp.float32)            # single load of the input tile
    w = w_ref[...].astype(jnp.float32)

    # conv-as-matmul on the MXU, f32 accumulation
    acc = jnp.dot(w, p, preferred_element_type=jnp.float32)      # (C_out, TL)
    acc = acc + b_ref[...].astype(jnp.float32)                   # lane-broadcast bias

    if act == "lrelu":
        acc = jnp.where(acc >= 0.0, acc, LRELU_SLOPE * acc)
    elif act == "tanh":
        acc = jnp.tanh(acc)

    if norm:
        # PixelNorm over channels (sublane axis) -> cheap VPU reduction
        ms = jnp.mean(acc * acc, axis=0, keepdims=True)           # (1, TL)
        acc = acc * lax.rsqrt(ms + PIXELNORM_EPS)

    o_ref[...] = acc.astype(o_ref.dtype)


def conv_block(x, weight, bias, *, stride=1, padding=1, act="lrelu", norm=True,
               tile_l=1024):
    """ConvBlock forward (NCHW): equalized-LR conv2d + bias + act + PixelNorm."""
    N, C_in, H, W = x.shape
    C_out, _, KH, KW = weight.shape
    s, p = stride, padding
    H_out = (H + 2 * p - KH) // s + 1
    W_out = (W + 2 * p - KW) // s + 1
    L = H_out * W_out
    K = C_in * KH * KW

    # equalized-LR scale folded into the (tiny) weight matrix, as in the module
    scale = math.sqrt(2.0) / math.sqrt(C_in)
    w2 = (weight * scale).reshape(C_out, K).astype(x.dtype)
    b2 = bias.reshape(C_out, 1).astype(x.dtype)

    # im2col (pure layout plumbing): (N, K, L), K ordered (C_in, kh, kw) to
    # match weight.reshape(C_out, C_in*KH*KW); spatial flattened on the lane axis.
    x_pad = jnp.pad(x, ((0, 0), (0, 0), (p, p), (p, p)))
    cols = []
    for kh in range(KH):
        for kw in range(KW):
            cols.append(x_pad[:, :,
                              kh:kh + (H_out - 1) * s + 1:s,
                              kw:kw + (W_out - 1) * s + 1:s])
    patches = jnp.stack(cols, axis=2)            # (N, C_in, KH*KW, H_out, W_out)
    patches = patches.reshape(N, K, L)           # lane-dense spatial axis

    # lane tile: full L for small maps, otherwise a multiple-of-128 tile
    tl = L if L <= tile_l else tile_l
    grid = (N, pl.cdiv(L, tl))

    kernel = partial(_convblock_kernel, act=act, norm=norm)

    out = pl.pallas_call(
        kernel,
        out_shape=jax.ShapeDtypeStruct((N, C_out, L), x.dtype),
        grid=grid,
        in_specs=[
            pl.BlockSpec((None, K, tl), lambda n, l: (n, 0, l)),    # patches
            pl.BlockSpec((C_out, K), lambda n, l: (0, 0)),          # weights
            pl.BlockSpec((C_out, 1), lambda n, l: (0, 0)),          # bias
        ],
        out_specs=pl.BlockSpec((None, C_out, tl), lambda n, l: (n, 0, l)),
        compiler_params=pltpu.CompilerParams(
            dimension_semantics=("parallel", "parallel")),
    )(patches, w2, b2)

    return out.reshape(N, C_out, H_out, W_out)


def conv_block_ref(x, weight, bias, *, stride=1, padding=1, act="lrelu", norm=True):
    # pure-JAX reference mirroring the PyTorch ConvBlock forward
    scale = math.sqrt(2.0) / math.sqrt(x.shape[1])
    out = lax.conv_general_dilated(
        x, weight * scale,
        window_strides=(stride, stride),
        padding=[(padding, padding), (padding, padding)],
        dimension_numbers=("NCHW", "OIHW", "NCHW"))
    out = out + bias.reshape(1, -1, 1, 1)
    if act == "lrelu":
        out = jnp.where(out >= 0.0, out, LRELU_SLOPE * out)
    elif act == "tanh":
        out = jnp.tanh(out)
    if norm:
        out = out * lax.rsqrt(jnp.mean(out * out, axis=1, keepdims=True) + PIXELNORM_EPS)
    return out


if __name__ == "__main__":
    key = jax.random.PRNGKey(0)
    kx, kw, kb = jax.random.split(key, 3)

    N, C_in, C_out, H, W, Ksz = 2, 4, 8, 16, 16, 3
    x = jax.random.normal(kx, (N, C_in, H, W), dtype=jnp.float32)
    weight = jax.random.normal(kw, (C_out, C_in, Ksz, Ksz), dtype=jnp.float32)
    bias = 0.1 * jax.random.normal(kb, (C_out,), dtype=jnp.float32)

    out = jax.block_until_ready(
        conv_block(x, weight, bias, stride=1, padding=1, act="lrelu", norm=True))
    ref = conv_block_ref(x, weight, bias, stride=1, padding=1, act="lrelu", norm=True)

    assert out.shape == (N, C_out, H, W), out.shape
    assert jnp.allclose(out, ref, atol=1e-3, rtol=1e-3), (
        "mismatch vs reference, max abs diff = %g" % float(jnp.max(jnp.abs(out - ref))))

    print("KERNEL_OK")
</pallas_src>

<mosaic_0001>
module attributes {stable_mosaic.version = 11 : i64} {
  func.func @_convblock_kernel(%arg0: i32, %arg1: i32, %arg2: memref<1x36x256xf32, #tpu.memory_space<vmem>>, %arg3: memref<8x36xf32, #tpu.memory_space<vmem>>, %arg4: memref<8x1xf32, #tpu.memory_space<vmem>>, %arg5: memref<1x8x256xf32, #tpu.memory_space<vmem>>) attributes {dimension_semantics = [#tpu.dimension_semantics<parallel>, #tpu.dimension_semantics<parallel>], iteration_bounds = array<i64: 2, 1>, scalar_prefetch = 0 : i64, scratch_operands = 0 : i64, tpu.core_type = #tpu.core_type<tc>, window_params = [{transform_indices = @transform_0, window_bounds = array<i64: 1, 36, 256>}, {pipeline_mode = #tpu.pipeline_mode<synchronous>, transform_indices = @transform_1, window_bounds = array<i64: 8, 36>}, {pipeline_mode = #tpu.pipeline_mode<synchronous>, transform_indices = @transform_2, window_bounds = array<i64: 8, 1>}, {transform_indices = @transform_3, window_bounds = array<i64: 1, 8, 256>}]} {
    %c0 = arith.constant 0 : index
    %c0_0 = arith.constant 0 : index
    %c0_1 = arith.constant 0 : index
    %0 = vector.load %arg2[%c0, %c0_0, %c0_1] : memref<1x36x256xf32, #tpu.memory_space<vmem>>, vector<1x36x256xf32>
    %1 = vector.shape_cast %0 : vector<1x36x256xf32> to vector<36x256xf32>
    %c0_2 = arith.constant 0 : index
    %c0_3 = arith.constant 0 : index
    %2 = vector.load %arg3[%c0_2, %c0_3] : memref<8x36xf32, #tpu.memory_space<vmem>>, vector<8x36xf32>
    %cst = arith.constant dense<0.000000e+00> : vector<8x256xf32>
    %3 = tpu.matmul %2, %1, %cst {dimension_numbers = #tpu.dot_dimension_numbers<[1], [0], [0], [1], [0, 0, 1, 1], [], []>} : vector<8x36xf32>, vector<36x256xf32>, vector<8x256xf32> -> vector<8x256xf32>
    %c0_4 = arith.constant 0 : index
    %c0_5 = arith.constant 0 : index
    %4 = vector.load %arg4[%c0_4, %c0_5] : memref<8x1xf32, #tpu.memory_space<vmem>>, vector<8x1xf32>
    %5 = vector.broadcast %4 : vector<8x1xf32> to vector<8x256xf32>
    %6 = arith.addf %3, %5 : vector<8x256xf32>
    %cst_6 = arith.constant 0.000000e+00 : f32
    %7 = vector.broadcast %cst_6 : f32 to vector<8x256xf32>
    %8 = arith.cmpf oge, %6, %7 : vector<8x256xf32>
    %cst_7 = arith.constant 2.000000e-01 : f32
    %9 = vector.broadcast %cst_7 : f32 to vector<8x256xf32>
    %10 = arith.mulf %9, %6 : vector<8x256xf32>
    %11 = arith.select %8, %6, %10 : vector<8x256xi1>, vector<8x256xf32>
    %12 = arith.mulf %11, %11 : vector<8x256xf32>
    %cst_8 = arith.constant dense<0.000000e+00> : vector<256xf32>
    %13 = vector.multi_reduction <add>, %12, %cst_8 [0] : vector<8x256xf32> to vector<256xf32>
    %14 = vector.shape_cast %13 : vector<256xf32> to vector<1x256xf32>
    %cst_9 = arith.constant 8.000000e+00 : f32
    %15 = vector.broadcast %cst_9 : f32 to vector<1x256xf32>
    %16 = arith.divf %14, %15 : vector<1x256xf32>
    %cst_10 = arith.constant 9.99999993E-9 : f32
    %17 = vector.broadcast %cst_10 : f32 to vector<1x256xf32>
    %18 = arith.addf %16, %17 : vector<1x256xf32>
    %19 = math.rsqrt %18 : vector<1x256xf32>
    %20 = vector.broadcast %19 : vector<1x256xf32> to vector<8x256xf32>
    %21 = arith.mulf %11, %20 : vector<8x256xf32>
    %c0_11 = arith.constant 0 : index
    %c0_12 = arith.constant 0 : index
    %c0_13 = arith.constant 0 : index
    %22 = vector.load %arg5[%c0_11, %c0_12, %c0_13] : memref<1x8x256xf32, #tpu.memory_space<vmem>>, vector<1x8x256xf32>
    %23 = vector.shape_cast %22 : vector<1x8x256xf32> to vector<8x256xf32>
    %24 = vector.shape_cast %21 : vector<8x256xf32> to vector<1x8x256xf32>
    tpu.vector_store %arg5[%c0_11, %c0_12, %c0_13], %24 {strides = array<i32>} : memref<1x8x256xf32, #tpu.memory_space<vmem>>, vector<1x8x256xf32>,
    return
  }
  func.func @transform_0(%arg0: i32, %arg1: i32) -> (i32, i32, i32) {
    %c0_i32 = arith.constant 0 : i32
    %c0_i32_0 = arith.constant 0 : i32
    return %arg0, %c0_i32, %arg1 : i32, i32, i32
  }
  func.func @transform_1(%arg0: i32, %arg1: i32) -> (i32, i32) {
    %c0_i32 = arith.constant 0 : i32
    %c0_i32_0 = arith.constant 0 : i32
    %c0_i32_1 = arith.constant 0 : i32
    return %c0_i32, %c0_i32_0 : i32, i32
  }
  func.func @transform_2(%arg0: i32, %arg1: i32) -> (i32, i32) {
    %c0_i32 = arith.constant 0 : i32
    %c0_i32_0 = arith.constant 0 : i32
    %c0_i32_1 = arith.constant 0 : i32
    return %c0_i32, %c0_i32_0 : i32, i32
  }
  func.func @transform_3(%arg0: i32, %arg1: i32) -> (i32, i32, i32) {
    %c0_i32 = arith.constant 0 : i32
    %c0_i32_0 = arith.constant 0 : i32
    return %arg0, %c0_i32, %arg1 : i32, i32, i32
  }
}

</mosaic_0001>

<llo_original>
// kernel: tpu_custom_call.1
$region0: #{tpu_custom_call.1}
  #allocation0 [shape = 'u32[]', space=smem, size = 0x4, offset = 0x4, fixed_abs, tag = 'smem constant byte address 0x4 - core index']
  #allocation1 [shape = 'u32[144,128]{1,0:T(1,128)}', space=vmem, size = 0x12000, scoped, tag = 'internal scratch']
  %s0 = inlined_call_operand.vmem [shape: f32[2,36,256], index: 0, kind: input, shape index: {}]
  %s1 = inlined_call_operand.vmem [shape: f32[8,36], index: 1, kind: input, shape index: {}]
  %s2 = inlined_call_operand.vmem [shape: f32[8,1], index: 2, kind: input, shape index: {}]
  %s3 = inlined_call_operand.hbm [shape: f32[2,8,256], index: 3, kind: output, shape index: {}]
  %s4 = sld [smem:[#allocation0]]
  $region45: #{tpu_custom_call.1} parent=0
    _
  %s6 = ssub.s32 1, %s4
  %s7 = scalar_select 0, %s6, %s4
  $region1: #{tpu_custom_call.1} parent=0
    #allocation2 [shape = 'u8[16384]{0}', space=vmem, size = 0x4000, scoped, tag = 'output window, operand 0']
    #allocation3 [shape = 's32[2]{0}', space=sflag, size = 0x8, scoped, tag = 'scoped memory for tpu_custom_call.1']
    %8 = vsyncpa [#allocation3], 0
    %s9 = scalar_lea.sflag [#allocation3], 1
    %10 = vsyncpa %s9, 0
    loop: start=0, step=1, limit=4
    $region2: #{tpu_custom_call.1} parent=1 // loop_pre_header
      _
    $region3: #{tpu_custom_call.1} parent=1 // loop_header
      %s12 = sphi 0, %s16
      %p13 = scmp.ge.s32.totalorder %s12, 4
      %s19 = sphi 0, %s31
      %s20 = sphi 0, %s27
      %s21 = sphi 0, %s19
      %s22 = sphi 0, %s20
      %s23 = sphi 0, %s21
      %s24 = sphi 0, %s22
      %s36 = sphi 0, %s38
      %s39 = sphi 0, %s36
      %s40 = sphi 0, %s39
      %s56 = sphi 0, %s40
      %s60 = sphi 0, %s60
      %s62 = sphi 0, %s60
      %s63 = sphi 0, %s62
      %s77 = sphi 0, %s63
      %s81 = sphi 0, %s81
      %s83 = sphi 0, %s81
      %s84 = sphi 0, %s83
      %s98 = sphi 0, %s84
      %s106 = sphi 0, %s108
      %s109 = sphi 0, %s106
      %s110 = sphi 0, %s109
      %s126 = sphi 0, %s110
    $region4: #{tpu_custom_call.1} parent=1 // loop_header_branch
      %15 = sbr.rel (%p13) target = $region8
    $region5: #{tpu_custom_call.1} parent=1 // loop_body
      %s17 = ssub.s32 %s12, 1
      %s18 = ssub.s32 %s12, 2
      %s25 = sadd.s32 1, %s20
      %p26 = scmp.ge.s32.totalorder %s25, 1
      %s27 = scalar_select %p26, 0, %s25
      %s28 = sadd.s32 1, %s19
      %s29 = scalar_select %p26, %s28, %s19
      %p30 = scmp.ge.s32.totalorder %s29, 2
      %s31 = scalar_select %p30, 0, %s29
      %s32 = ssub.s32 %s19, %s31
      %s33 = ssub.s32 %s20, %s27
      %s34 = sor.u32 %s32, %s33
      %p35 = scmp.eq.s32.totalorder %s34, 0
      %s37 = sadd.s32 %s36, 1
      %s38 = scalar_select %p35, %s36, %s37
      %p41 = pneg %p35
      %p42 = scmp.eq.s32.totalorder %s12, 1
      %p43 = por %p41, %p42
      %p44 = scmp.ne.s32.totalorder %s36, %s39
      %p45 = scmp.eq.s32.totalorder %s12, 0
      %p46 = por %p44, %p45
      %p47 = scmp.ne.s32.totalorder %s36, %s39
      %p48 = scmp.eq.s32.totalorder %s17, 1
      %p49 = por %p47, %p48
      %p50 = scmp.ne.s32.totalorder %s39, %s40
      %p51 = scmp.eq.s32.totalorder %s17, 0
      %p52 = por %p50, %p51
      %p53 = scmp.ne.s32.totalorder %s39, %s40
      %p54 = scmp.eq.s32.totalorder %s18, 1
      %p55 = por %p53, %p54
      %p57 = scmp.ne.s32.totalorder %s40, %s56
      %p58 = scmp.eq.s32.totalorder %s18, 0
      %p59 = por %p57, %p58
      %s61 = sadd.s32 %s60, 1
      %p64 = scmp.eq.s32.totalorder %s12, 1
      %p65 = scmp.ne.s32.totalorder %s60, %s62
      %p66 = scmp.eq.s32.totalorder %s12, 0
      %p67 = por %p65, %p66
      %p68 = scmp.ne.s32.totalorder %s60, %s62
      %p69 = scmp.eq.s32.totalorder %s17, 1
      %p70 = por %p68, %p69
      %p71 = scmp.ne.s32.totalorder %s62, %s63
      %p72 = scmp.eq.s32.totalorder %s17, 0
      %p73 = por %p71, %p72
      %p74 = scmp.ne.s32.totalorder %s62, %s63
      %p75 = scmp.eq.s32.totalorder %s18, 1
      %p76 = por %p74, %p75
      %p78 = scmp.ne.s32.totalorder %s63, %s77
      %p79 = scmp.eq.s32.totalorder %s18, 0
      %p80 = por %p78, %p79
      %s82 = sadd.s32 %s81, 1
      %p85 = scmp.eq.s32.totalorder %s12, 1
      %p86 = scmp.ne.s32.totalorder %s81, %s83
      %p87 = scmp.eq.s32.totalorder %s12, 0
      %p88 = por %p86, %p87
      %p89 = scmp.ne.s32.totalorder %s81, %s83
      %p90 = scmp.eq.s32.totalorder %s17, 1
      %p91 = por %p89, %p90
      %p92 = scmp.ne.s32.totalorder %s83, %s84
      %p93 = scmp.eq.s32.totalorder %s17, 0
      %p94 = por %p92, %p93
      %p95 = scmp.ne.s32.totalorder %s83, %s84
      %p96 = scmp.eq.s32.totalorder %s18, 1
      %p97 = por %p95, %p96
      %p99 = scmp.ne.s32.totalorder %s84, %s98
      %p100 = scmp.eq.s32.totalorder %s18, 0
      %p101 = por %p99, %p100
      %s102 = ssub.s32 %s19, %s31
      %s103 = ssub.s32 %s20, %s27
      %s104 = sor.u32 %s102, %s103
      %p105 = scmp.eq.s32.totalorder %s104, 0
      %s107 = sadd.s32 %s106, 1
      %s108 = scalar_select %p105, %s106, %s107
      %p111 = pneg %p105
      %p112 = scmp.eq.s32.totalorder %s12, 1
      %p113 = por %p111, %p112
      %p114 = scmp.ne.s32.totalorder %s106, %s109
      %p115 = scmp.eq.s32.totalorder %s12, 0
      %p116 = por %p114, %p115
      %p117 = scmp.ne.s32.totalorder %s106, %s109
      %p118 = scmp.eq.s32.totalorder %s17, 1
      %p119 = por %p117, %p118
      %p120 = scmp.ne.s32.totalorder %s109, %s110
      %p121 = scmp.eq.s32.totalorder %s17, 0
      %p122 = por %p120, %p121
      %p123 = scmp.ne.s32.totalorder %s109, %s110
      %p124 = scmp.eq.s32.totalorder %s18, 1
      %p125 = por %p123, %p124
      %p127 = scmp.ne.s32.totalorder %s110, %s126
      %p128 = scmp.eq.s32.totalorder %s18, 0
      %p129 = por %p127, %p128
      %p130 = scmp.le.s32.totalorder 1, %s12
      %p131 = scmp.lt.s32.totalorder %s12, 3
      %p132 = pnand %p130, %p131
      %p133 = pneg %p132
      // Predicated region
      $region9: #{tpu_custom_call.1} parent=5 // pred_check
        _
      $region10: #{tpu_custom_call.1} parent=5 // pred_check_branch
        %135 = sbr.rel (%p132) target = $region12
      $region11: #{tpu_custom_call.1} parent=5 // pred_region
        %s136 = ssub.s32 %s12, 1
        // Predicated region
        $region13: #{tpu_custom_call.1} parent=11 // pred_check
          %p137 = pneg %p73
        $region14: #{tpu_custom_call.1} parent=11 // pred_check_branch
          %139 = sbr.rel (%p137) target = $region16
        $region15: #{tpu_custom_call.1} parent=11 // pred_region
          _
        $region16: #{tpu_custom_call.1} parent=11 // pred_fallthru
          _
        // Predicated region
        $region17: #{tpu_custom_call.1} parent=11 // pred_check
          %p140 = pneg %p94
        $region18: #{tpu_custom_call.1} parent=11 // pred_check_branch
          %142 = sbr.rel (%p140) target = $region20
        $region19: #{tpu_custom_call.1} parent=11 // pred_region
          _
        $region20: #{tpu_custom_call.1} parent=11 // pred_fallthru
          _
      $region12: #{tpu_custom_call.1} parent=5 // pred_fallthru
        _
      %p143 = scmp.lt.s32.totalorder %s12, 2
      // Predicated region
      $region21: #{tpu_custom_call.1} parent=5 // pred_check
        %p144 = pneg %p143
      $region22: #{tpu_custom_call.1} parent=5 // pred_check_branch
        %146 = sbr.rel (%p144) target = $region24
      $region23: #{tpu_custom_call.1} parent=5 // pred_region
        // Predicated region
        $region25: #{tpu_custom_call.1} parent=23 // pred_check
          %p147 = pneg %p46
        $region26: #{tpu_custom_call.1} parent=23 // pred_check_branch
          %149 = sbr.rel (%p147) target = $region28
        $region27: #{tpu_custom_call.1} parent=23 // pred_region
          %s150 = smul.u32 2, %s20
          %p151 = scmp.lt.s32.totalorder %s19, 1
          %s152 = scalar_select %p151, %s19, 1
          %p153 = scmp.lt.s32.totalorder %s150, 1
          %s154 = scalar_select %p153, %s150, 1
          %s155 = smul.addr %s152, 10
          %s156 = sadd.s32 %s154, %s155
          %s157 = smul.addr %s156, 8
          %s158 = scalar_lea.vmem %s0, %s157
          %s159 = smul.u32 2, %s20
        $region28: #{tpu_custom_call.1} parent=23 // pred_fallthru
          _
      $region24: #{tpu_custom_call.1} parent=5 // pred_fallthru
        _
      %p160 = scmp.le.s32.totalorder 1, %s12
      %p161 = scmp.lt.s32.totalorder %s12, 3
      %p162 = pnand %p160, %p161
      %p163 = pneg %p162
      // Predicated region
      $region29: #{tpu_custom_call.1} parent=5 // pred_check
        _
      $region30: #{tpu_custom_call.1} parent=5 // pred_check_branch
        %165 = sbr.rel (%p162) target = $region32
      $region31: #{tpu_custom_call.1} parent=5 // pred_region
        %s166 = ssub.s32 %s12, 1
        %s167 = smul.u32 2, %s22
        %p168 = scmp.lt.s32.totalorder %s21, 1
        %s169 = scalar_select %p168, %s21, 1
        %p170 = scmp.lt.s32.totalorder %s167, 1
        %s171 = scalar_select %p170, %s167, 1
        %s172 = smul.addr %s169, 10
        %s173 = sadd.s32 %s171, %s172
        %s174 = smul.addr %s173, 8
        %s175 = scalar_lea.vmem %s0, %s174
        %p176 = pneg %p52
        %p177 = pneg %p49
        %p178 = pneg %p73
        %p179 = pneg %p70
        %p180 = pneg %p94
        %p181 = pneg %p91
        %p182 = pneg %p122
        %p183 = pneg %p119
        %s184 = sand.u32 %s109, 1
        %s185 = scalar_lea.sflag [#allocation3], %s184
        %s186 = sand.u32 %s109, 1
        %s187 = smul.addr %s186, 16
        %s188 = scalar_lea.vmem [#allocation2], %s187
        %s189 = smul.u32 2, %s22
        %p190 = scmp.lt.s32.totalorder %s21, 1
        %s191 = scalar_select %p190, %s21, 1
        %p192 = scmp.lt.s32.totalorder %s189, 1
        %s193 = scalar_select %p192, %s189, 1
        %s194 = smul.addr %s191, 10
        %s195 = sadd.s32 %s193, %s194
        %s196 = smul.addr %s195, 8
        %s197 = scalar_lea.vmem %s0, %s196
        %s198 = smul.u32 2, %s22
        %s199 = smul.u32 2, %s22
        %v200 = vld [vmem:[%s197] sm:$0xff]
        %v201 = vld [vmem:[%s197 + $0x8] sm:$0xff]
        %v202 = vld [vmem:[%s197 + $0x10] sm:$0xff]
        %v203 = vld [vmem:[%s197 + $0x18] sm:$0xff]
        %v204 = vld [vmem:[%s197 + $0x20] sm:$0xff]
        %v205 = vld [vmem:[%s197 + $0x28] sm:$0xff]
        %v206 = vld [vmem:[%s197 + $0x30] sm:$0xff]
        %v207 = vld [vmem:[%s197 + $0x38] sm:$0xff]
        %v208 = vld [vmem:[%s197 + $0x40] sm:$0xf]
        %v209 = vld [vmem:[%s197 + $0x48] sm:$0xf]
        %v210 = vld [vmem:[%s1] sm:$0xff]
        %v211 = vld [vmem:[%s2] sm:$0xff]
        %213 = vset.pattern.permute.xlu0 0
        %214 = vperm.xlu0 %213, %v211
        %v215 = vpop.permute.xlu0 %214
        %vm217 = vcmask 293888
        %v219 = vsel %vm217, %v210, 0
        %vm221 = vcmask 1043456
        %v223 = vsel %vm221, %v208, 0
        %v226 = vsel %vm221, %v209, 0
        %228 = vmatprep.subr.mxu0 %v201
        %229 = vmatpush1.msra.mxu0 %v200
        %230 = vmatprep.subr.mxu0 %v203
        %231 = vmatpush1.msra.mxu0 %v202
        %232 = vmatprep.subr.mxu0 %v205
        %233 = vmatpush1.msra.mxu0 %v204
        %234 = vmatprep.subr.mxu0 %v207
        %235 = vmatpush1.msra.mxu0 %v206
        %236 = vmatprep.subr.mxu0 %v226
        %237 = vmatpush1.msra.mxu0 %v223
        %238 = vmatprep.subr.mxu0 0.0
        %239 = vmatpush1.msra.mxu0 0.0
        %240 = vmatprep.subr.mxu0 0.0
        %241 = vmatpush1.msra.mxu0 0.0
        %242 = vmatprep.subr.mxu0 0.0
        %243 = vmatpush1.msra.mxu0 0.0
        %244 = vmatprep.subr.mxu0 0.0
        %245 = vmatpush1.msra.mxu0 0.0
        %246 = vmatprep.subr.mxu0 0.0
        %247 = vmatpush1.msra.mxu0 0.0
        %248 = vmatprep.subr.mxu0 0.0
        %249 = vmatpush1.msra.mxu0 0.0
        %250 = vmatprep.subr.mxu0 0.0
        %251 = vmatpush1.msra.mxu0 0.0
        %252 = vmatprep.subr.mxu0 0.0
        %253 = vmatpush1.msra.mxu0 0.0
        %254 = vmatprep.subr.mxu0 0.0
        %255 = vmatpush1.msra.mxu0 0.0
        %256 = vmatprep.subr.mxu0 0.0
        %257 = vmatpush1.msra.mxu0 0.0
        %258 = vmatprep.subr.mxu0 0.0
        %259 = vmatpush1.msra.mxu0 0.0
        %260 = vmatprep.subr.mxu0 0.0
        %261 = vmatpush1.msra.mxu0 0.0
        %262 = vmatprep.subr.mxu0 0.0
        %263 = vmatpush1.msra.mxu0 0.0
        %264 = vmatprep.subr.mxu0 0.0
        %265 = vmatpush1.msra.mxu0 0.0
        %266 = vmatprep.subr.mxu0 0.0
        %267 = vmatpush1.msra.mxu0 0.0
        %268 = vmatprep.subr.mxu0 0.0
        %269 = vmatpush1.msra.mxu0 0.0
        %270 = vmatprep.subr.mxu0 0.0
        %271 = vmatpush1.msra.mxu0 0.0
        %272 = vmatprep.subr.mxu0 0.0
        %273 = vmatpush1.msra.mxu0 0.0
        %274 = vmatprep.subr.mxu0 0.0
        %275 = vmatpush1.msra.mxu0 0.0
        %276 = vmatprep.subr.mxu0 0.0
        %277 = vmatpush1.msra.mxu0 0.0
        %278 = vmatprep.subr.mxu0 0.0
        %279 = vmatpush1.msra.mxu0 0.0
        %280 = vmatprep.subr.mxu0 0.0
        %281 = vmatpush1.msra.mxu0 0.0
        %282 = vmatprep.subr.mxu0 0.0
        %283 = vmatpush1.msra.mxu0 0.0
        %284 = vmatprep.subr.mxu0 0.0
        %285 = vmatpush1.msra.mxu0 0.0
        %286 = vmatprep.subr.mxu0 0.0
        %287 = vmatpush1.msra.mxu0 0.0
        %288 = vmatprep.subr.mxu0 0.0
        %289 = vmatpush1.msra.mxu0 0.0
        %290 = vmatprep.subr.mxu0 0.0
        %291 = vmatpush1.msra.mxu0 0.0
        %292 = vmatprep.mubr.f32.mxu0 0.0
        %293 = vmatmul.mubr.f32.gmra.mrb[0].mxu0 %v219
        %v294 = vpop.f32.mrb[0].mxu0
        %v295 = vadd.f32 %v215, %v294
        %v296 = vpop.f32.mrb[0].mxu0
        %v297 = vadd.f32 %v215, %v296
        %298 = vdwg.mxu0
        %vm299 = vcmp.ge.f32.partialorder %v295, 0.0
        %vm300 = vcmp.ge.f32.partialorder %v297, 0.0
        %v301 = vmul.f32 %v295, 0.2
        %v302 = vmul.f32 %v297, 0.2
        %v303 = vsel %vm299, %v295, %v301
        %v304 = vsel %vm300, %v297, %v302
        %v305 = vmul.f32 %v303, %v303
        %v306 = vmul.f32 %v304, %v304
        %v307 = vrot.slane %v305, 4
        %v308 = vadd.f32 %v305, %v307
        %v309 = vrot.slane %v308, 2
        %v310 = vadd.f32 %v308, %v309
        %v311 = vrot.slane %v310, 1
        %v312 = vadd.f32 %v310, %v311
        %v313 = vrot.slane %v306, 4
        %v314 = vadd.f32 %v306, %v313
        %v315 = vrot.slane %v314, 2
        %v316 = vadd.f32 %v314, %v315
        %v317 = vrot.slane %v316, 1
        %v318 = vadd.f32 %v316, %v317
        %v319 = vrcp.pop 8.0
        %v320 = vmul.f32 %v312, %v319
        %v321 = vmul.f32 %v318, %v319
        %v322 = vadd.f32 %v320, 1e-08
        %v323 = vadd.f32 %v321, 1e-08
        %v324 = vrsqrt.pop %v322
        %v325 = vrsqrt.pop %v323
        %v326 = vmul.f32 %v303, %v324
        %v327 = vmul.f32 %v304, %v325
        %328 = vst [vmem:[%s188] sm:$0xff] %v326
        %329 = vst [vmem:[%s188 + $0x8] sm:$0xff] %v327
        %s330 = sand.u32 %s109, 1
        %s331 = scalar_lea.sflag [#allocation3], %s330
        %s332 = sand.u32 %s109, 1
        %s333 = smul.addr %s332, 16
        %s334 = scalar_lea.vmem [#allocation2], %s333
        // Predicated region
        $region33: #{tpu_custom_call.1} parent=31 // pred_check
          %p335 = pneg %p119
        $region34: #{tpu_custom_call.1} parent=31 // pred_check_branch
          %337 = sbr.rel (%p335) target = $region36
        $region35: #{tpu_custom_call.1} parent=31 // pred_region
          %s338 = smul.u32 2, %s22
          %s340 = ssub.s32 256, 256
          %341 = vsyncadd %s331, %s340
          %s342 = smul.addr %s21, 2
          %s343 = sadd.s32 %s338, %s342
          %s344 = smul.addr %s343, 128
          %s345 = scalar_lea.hbm %s3, %s344
          %s347 = sshll.u32 %s334, 4
          %s348 = int_to_ptr.vmem [resolvable:$true] %s347
          %350 = dma.vmem_to_hbm [thread:$0]  %s348, 256, %s345, %s331
        $region36: #{tpu_custom_call.1} parent=31 // pred_fallthru
          _
      $region32: #{tpu_custom_call.1} parent=5 // pred_fallthru
        _
      %p351 = scmp.le.s32.totalorder 2, %s12
      // Predicated region
      $region37: #{tpu_custom_call.1} parent=5 // pred_check
        %p352 = pneg %p351
      $region38: #{tpu_custom_call.1} parent=5 // pred_check_branch
        %354 = sbr.rel (%p352) target = $region40
      $region39: #{tpu_custom_call.1} parent=5 // pred_region
        %s355 = ssub.s32 %s12, 2
        // Predicated region
        $region41: #{tpu_custom_call.1} parent=39 // pred_check
          %p356 = pneg %p125
        $region42: #{tpu_custom_call.1} parent=39 // pred_check_branch
          %358 = sbr.rel (%p356) target = $region44
        $region43: #{tpu_custom_call.1} parent=39 // pred_region
          %s359 = sand.u32 %s110, 1
          %s360 = scalar_lea.sflag [#allocation3], %s359
          %s361 = sand.u32 %s110, 1
          %s362 = smul.addr %s361, 16
          %s363 = scalar_lea.vmem [#allocation2], %s362
          %364 = dma.done %s360, 256
        $region44: #{tpu_custom_call.1} parent=39 // pred_fallthru
          _
      $region40: #{tpu_custom_call.1} parent=5 // pred_fallthru
        _
    $region6: #{tpu_custom_call.1} parent=1 // loop_footer
      %s16 = sadd.s32 1, %s12
    $region7: #{tpu_custom_call.1} parent=1 // loop_footer_branch
      %11 = sbr.rel target = $region3
    $region8: #{tpu_custom_call.1} parent=1 // loop_exit
      _
    %365 = vsyncpa [#allocation3], 1
    %s366 = scalar_lea.sflag [#allocation3], 1
    %367 = vsyncpa %s366, 1

</llo_original>
